<compile_context>
chip_gen: v7x
topology: tpu7x:2x2x1
jax: 0.10.0
libtpu: 0.0.40
codegen_flags: <defaults>
</compile_context>

<pallas_src>
import jax
import jax.numpy as jnp
from jax.experimental import pallas as pl
from jax.experimental.pallas import tpu as pltpu

HID = 20           # true hidden width of each MLP
H = 64             # lane-padded fused hidden width (beta block + gamma block + pad)
ROWS = 8           # sublane rows used for the tiny (1 x H) MLP state
NVEC = 8           # rows of the packed vector buffer
BLANE = 0          # beta hidden block occupies lanes [0, 20)
GLANE = 20         # gamma hidden block occupies lanes [20, 40)
MXU_ROW_PAD = 256  # LHS row padding for the batched beta/gamma precompute


def _softplus(x):
    # matches torch.nn.Softplus(beta=1, threshold=20)
    return jnp.where(x > 20.0, x, jnp.log1p(jnp.exp(jnp.minimum(x, 20.0))))


def _sigmoid(x):
    return 1.0 / (1.0 + jnp.exp(-x))


def _mlp_chain(h1, mat_ref, b2, b3, b4):
    """Shared block-diagonal tanh-MLP chain: h1 (M,H) f32 -> z (M,H) f32.

    Weights may be f32 or bf16; activations are cast to the weight dtype at the
    MXU inputs, accumulation stays f32 via preferred_element_type.
    """
    wdt = mat_ref.dtype
    h2 = jnp.tanh(jnp.dot(h1.astype(wdt), mat_ref[0],
                          preferred_element_type=jnp.float32) + b2)
    h3 = jnp.tanh(jnp.dot(h2.astype(wdt), mat_ref[1],
                          preferred_element_type=jnp.float32) + b3)
    return jnp.dot(h3.astype(wdt), mat_ref[2],
                   preferred_element_type=jnp.float32) + b4


def _sir_rhs_store(beta, gamma, yint_ref, out_ref):
    """SIR elementwise RHS + single lane-select store into (B,3) output."""
    S = yint_ref[:, 0:1]          # (B,1)
    I = yint_ref[:, 1:2]          # (B,1)   (R column is present but unused, as in PyTorch)
    integro = yint_ref[:, 3:4]    # (B,1)

    bSI = beta * S * I
    gI = gamma * I
    dS = -bSI + integro
    dI = bSI - gI
    dR = gI - integro

    col = jax.lax.broadcasted_iota(jnp.int32, out_ref.shape, 1)
    out_ref[...] = jnp.where(col == 0, dS, jnp.where(col == 1, dI, dR))


# ------------------------------- kernels -------------------------------------

def ode_func_kernel(t_ref,      # SMEM f32[1]: [t]
                    yint_ref,   # VMEM (B, 4): [S, I, R, integro]
                    vec_ref,    # VMEM (8, 64) f32: rows [w1, b1, b2, b3, b4, 0, 0, 0]
                    mat_ref,    # VMEM (3, 64, 64) f32/bf16: [W2, W3, W4] block-diag fused
                    out_ref):   # VMEM (B, 3)
    t = t_ref[0]
    w1 = vec_ref[0:1, :]
    b1 = vec_ref[1:2, :]
    b2 = vec_ref[2:3, :]
    b3 = vec_ref[3:4, :]
    b4 = vec_ref[4:5, :]        # lane 0 = b4_beta, lane 1 = b4_gamma

    h1 = jnp.tanh(t * jnp.broadcast_to(w1, (ROWS, H)) + b1)      # (8,64)
    z = _mlp_chain(h1, mat_ref, b2, b3, b4)                      # (8,64)
    beta = _softplus(z[0:1, 0:1])                                # (1,1)
    gamma = _sigmoid(z[0:1, 1:2])                                # (1,1)
    _sir_rhs_store(beta, gamma, yint_ref, out_ref)


def beta_gamma_kernel(ts_ref,   # VMEM (N_pad, 1) f32: solver times (zero-padded)
                      vec_ref,  # VMEM (8, 64) f32
                      mat_ref,  # VMEM (3, 64, 64) f32/bf16
                      out_ref): # VMEM (N_pad, 2): col 0 = beta(t_i), col 1 = gamma(t_i)
    w1 = vec_ref[0:1, :]
    b1 = vec_ref[1:2, :]
    b2 = vec_ref[2:3, :]
    b3 = vec_ref[3:4, :]
    b4 = vec_ref[4:5, :]

    h1 = jnp.tanh(ts_ref[...] * w1 + b1)                         # (N_pad,64)
    z = _mlp_chain(h1, mat_ref, b2, b3, b4)                      # (N_pad,64)
    beta = _softplus(z[:, 0:1])
    gamma = _sigmoid(z[:, 1:2])
    col = jax.lax.broadcasted_iota(jnp.int32, out_ref.shape, 1)
    out_ref[...] = jnp.where(col == 0, beta, gamma)


def sir_rhs_kernel(bg_ref,      # SMEM f32[2]: [beta, gamma] (precomputed)
                   yint_ref,    # VMEM (B, 4)
                   out_ref):    # VMEM (B, 3)
    _sir_rhs_store(bg_ref[0], bg_ref[1], yint_ref, out_ref)


# ------------------------------- wrappers -------------------------------------

_VMEM = pl.BlockSpec(memory_space=pltpu.MemorySpace.VMEM)
_SMEM = pl.BlockSpec(memory_space=pltpu.MemorySpace.SMEM)


def _ode_func_forward(t, y, integro, vecs, mats):
    """Exact ODEFunc.forward(t, y, integro): t scalar, y (B,3), integro (B,1)."""
    B = y.shape[0]
    t_arr = jnp.reshape(jnp.asarray(t, jnp.float32), (1,))
    yint = jnp.concatenate(
        [y.astype(jnp.float32), integro.astype(jnp.float32)], axis=1)   # (B,4)
    wbytes = int(mats.size) * mats.dtype.itemsize + int(vecs.size) * vecs.dtype.itemsize
    return pl.pallas_call(
        ode_func_kernel,
        out_shape=jax.ShapeDtypeStruct((B, 3), jnp.float32),
        in_specs=[_SMEM, _VMEM, _VMEM, _VMEM],
        out_specs=_VMEM,
        cost_estimate=pl.CostEstimate(
            flops=int(3 * 2 * ROWS * H * H + 12 * B),
            transcendentals=int(3 * ROWS * H + 4),
            bytes_accessed=int(wbytes + 4 * (4 * B + 3 * B + 1)),
        ),
    )(t_arr, yint, vecs, mats)


ode_func_forward = jax.jit(_ode_func_forward)


def _beta_gamma_of_t(ts, vecs, mats):
    """Amortized path: beta(t_i), gamma(t_i) for all solver times in ONE kernel.

    The weight pack is DMA'd once for the whole trajectory instead of once per
    RHS evaluation, and the LHS row count is padded to a multiple of 256 so the
    (N_pad,64)@(64,64) chain is well shaped for the v6e/v7x MXU (128 suffices
    on v5e; padding to 256 is still correct and cheap there).
    """
    n = ts.shape[0]
    n_pad = ((n + MXU_ROW_PAD - 1) // MXU_ROW_PAD) * MXU_ROW_PAD
    ts_col = jnp.zeros((n_pad, 1), jnp.float32).at[:n, 0].set(
        jnp.reshape(ts, (n,)).astype(jnp.float32))
    out = pl.pallas_call(
        beta_gamma_kernel,
        out_shape=jax.ShapeDtypeStruct((n_pad, 2), jnp.float32),
        in_specs=[_VMEM, _VMEM, _VMEM],
        out_specs=_VMEM,
    )(ts_col, vecs, mats)
    return out[:n]                       # (N, 2)


beta_gamma_of_t = jax.jit(_beta_gamma_of_t)


def _sir_rhs_forward(beta_gamma, y, integro):
    """Trivially cheap elementwise RHS given precomputed [beta, gamma] for one step."""
    B = y.shape[0]
    bg = jnp.reshape(beta_gamma.astype(jnp.float32), (2,))
    yint = jnp.concatenate(
        [y.astype(jnp.float32), integro.astype(jnp.float32)], axis=1)
    return pl.pallas_call(
        sir_rhs_kernel,
        out_shape=jax.ShapeDtypeStruct((B, 3), jnp.float32),
        in_specs=[_SMEM, _VMEM],
        out_specs=_VMEM,
    )(bg, yint)


sir_rhs_forward = jax.jit(_sir_rhs_forward)


# ----------------------- parameter construction (glue) -----------------------

def make_mlp_params(key, normal_std=None):
    """Returns list of (W, b) with PyTorch Linear shapes: W=(out,in), b=(out,)."""
    sizes = [(HID, 1), (HID, HID), (HID, HID), (1, HID)]
    keys = jax.random.split(key, 2 * len(sizes))
    params = []
    for i, (o, inp) in enumerate(sizes):
        if normal_std is not None:
            # mirrors nn.init.normal_(std=1.5), nn.init.constant_(bias, 0)
            W = normal_std * jax.random.normal(keys[2 * i], (o, inp))
            b = jnp.zeros((o,))
        else:
            bound = 1.0 / (inp ** 0.5)
            W = jax.random.uniform(keys[2 * i], (o, inp),
                                   minval=-bound, maxval=bound)
            b = jax.random.uniform(keys[2 * i + 1], (o,),
                                   minval=-bound, maxval=bound)
        params.append((W.astype(jnp.float32), b.astype(jnp.float32)))
    return params


def pack_params(beta_params, gamma_params, weight_dtype=jnp.float32):
    """Pack both MLPs into one 64-lane block-diagonal chain.

    vecs: (8, 64) f32, rows [w1, b1, b2, b3, b4, 0, 0, 0]; beta occupies lanes
          [0,20), gamma [20,40); row 4 lane 0 = b4_beta, lane 1 = b4_gamma.
          (Biases stay f32 regardless of weight_dtype; they are ~2 KiB.)
    mats: (3, 64, 64) weight_dtype = [W2, W3, W4]; W2/W3 block-diagonal, W4 has
          beta's w4 in column 0 (rows 0:20) and gamma's in column 1 (rows 20:40).
          Pass weight_dtype=jnp.bfloat16 on v6e/v7x to halve weight DMA bytes.
    """
    (bW1, bb1), (bW2, bb2), (bW3, bb3), (bW4, bb4) = beta_params
    (gW1, gb1), (gW2, gb2), (gW3, gb3), (gW4, gb4) = gamma_params

    vecs = jnp.zeros((NVEC, H), jnp.float32)
    vecs = vecs.at[0, BLANE:BLANE + HID].set(bW1[:, 0])
    vecs = vecs.at[0, GLANE:GLANE + HID].set(gW1[:, 0])
    vecs = vecs.at[1, BLANE:BLANE + HID].set(bb1)
    vecs = vecs.at[1, GLANE:GLANE + HID].set(gb1)
    vecs = vecs.at[2, BLANE:BLANE + HID].set(bb2)
    vecs = vecs.at[2, GLANE:GLANE + HID].set(gb2)
    vecs = vecs.at[3, BLANE:BLANE + HID].set(bb3)
    vecs = vecs.at[3, GLANE:GLANE + HID].set(gb3)
    vecs = vecs.at[4, 0].set(bb4[0])
    vecs = vecs.at[4, 1].set(gb4[0])

    mats = jnp.zeros((3, H, H), jnp.float32)
    mats = mats.at[0, BLANE:BLANE + HID, BLANE:BLANE + HID].set(bW2.T)
    mats = mats.at[0, GLANE:GLANE + HID, GLANE:GLANE + HID].set(gW2.T)
    mats = mats.at[1, BLANE:BLANE + HID, BLANE:BLANE + HID].set(bW3.T)
    mats = mats.at[1, GLANE:GLANE + HID, GLANE:GLANE + HID].set(gW3.T)
    mats = mats.at[2, BLANE:BLANE + HID, 0].set(bW4[0, :])
    mats = mats.at[2, GLANE:GLANE + HID, 1].set(gW4[0, :])
    return vecs, mats.astype(weight_dtype)


# ------------------------------- pure-JAX ref --------------------------------

def _mlp_ref(t, params, final_act):
    h = jnp.array([[t]], dtype=jnp.float32)
    for i, (W, b) in enumerate(params):
        h = jnp.dot(h, W.T, precision=jax.lax.Precision.HIGHEST) + b
        if i < len(params) - 1:
            h = jnp.tanh(h)
    return final_act(h)


def ode_func_ref(t, y, integro, beta_params, gamma_params):
    S = y[:, 0:1]
    I = y[:, 1:2]
    beta = _mlp_ref(t, beta_params, jax.nn.softplus)
    gamma = _mlp_ref(t, gamma_params, jax.nn.sigmoid)
    dS = -beta * S * I + integro
    dI = beta * S * I - gamma * I
    dR = gamma * I - integro
    return jnp.concatenate([dS, dI, dR], axis=1)


if __name__ == "__main__":
    key = jax.random.PRNGKey(0)
    k_beta, k_gamma, k_y, k_integro, k_t = jax.random.split(key, 5)

    beta_params = make_mlp_params(k_beta, normal_std=1.5)   # NN_beta custom init
    gamma_params = make_mlp_params(k_gamma)                 # NN_gamma default init

    B = 4
    t = jax.random.uniform(k_t, (), dtype=jnp.float32)
    y = jax.random.uniform(k_y, (B, 3), dtype=jnp.float32)          # [S, I, R]
    integro = 0.1 * jax.random.normal(k_integro, (B, 1), dtype=jnp.float32)

    ref = ode_func_ref(t, y, integro, beta_params, gamma_params)

    # 1) Fused single-call forward, f32 weights (default; right choice on v5e).
    vecs32, mats32 = pack_params(beta_params, gamma_params, jnp.float32)
    out_f32 = jax.block_until_ready(ode_func_forward(t, y, integro, vecs32, mats32))
    assert out_f32.shape == (B, 3)
    # tolerance covers the MXU's reduced-precision lowering of f32 matmuls
    assert jnp.allclose(out_f32, ref, atol=2e-2, rtol=2e-2), (out_f32, ref)

    # 2) Same kernel with bf16-stored weights (recommended on v6e/v7x).
    vecs16, mats16 = pack_params(beta_params, gamma_params, jnp.bfloat16)
    out_bf16 = jax.block_until_ready(ode_func_forward(t, y, integro, vecs16, mats16))
    # looser tolerance: bf16 weight/activation quantization of the MLPs
    assert jnp.allclose(out_bf16, ref, atol=1e-1, rtol=1e-1), (out_bf16, ref)

    # 3) Amortized odeint structure: precompute beta(t_i)/gamma(t_i) for a whole
    #    trajectory in one kernel, then drive the cheap elementwise RHS kernel.
    ts = jnp.linspace(0.0, 1.0, 8, dtype=jnp.float32)
    bg = jax.block_until_ready(beta_gamma_of_t(ts, vecs32, mats32))
    assert bg.shape == (8, 2)
    beta_ref = jnp.stack(
        [_mlp_ref(ti, beta_params, jax.nn.softplus)[0, 0] for ti in ts])
    gamma_ref = jnp.stack(
        [_mlp_ref(ti, gamma_params, jax.nn.sigmoid)[0, 0] for ti in ts])
    assert jnp.allclose(bg[:, 0], beta_ref, atol=2e-2, rtol=2e-2), (bg[:, 0], beta_ref)
    assert jnp.allclose(bg[:, 1], gamma_ref, atol=2e-2, rtol=2e-2), (bg[:, 1], gamma_ref)

    rhs0 = jax.block_until_ready(
        sir_rhs_forward(jnp.stack([beta_ref[0], gamma_ref[0]]), y, integro))
    ref0 = ode_func_ref(ts[0], y, integro, beta_params, gamma_params)
    assert jnp.allclose(rhs0, ref0, atol=1e-5, rtol=1e-5), (rhs0, ref0)

    print("KERNEL_OK")
</pallas_src>

<mosaic_0001>
module attributes {stable_mosaic.version = 11 : i64} {
  func.func @ode_func_kernel(%arg0: memref<1xf32, #tpu.memory_space<smem>>, %arg1: memref<4x4xf32, #tpu.memory_space<vmem>>, %arg2: memref<8x64xf32, #tpu.memory_space<vmem>>, %arg3: memref<3x64x64xf32, #tpu.memory_space<vmem>>, %arg4: memref<4x3xf32, #tpu.memory_space<vmem>>) attributes {dimension_semantics = [], scalar_prefetch = 0 : i64, scratch_operands = 0 : i64, tpu.core_type = #tpu.core_type<tc>} {
    %c0 = arith.constant 0 : index
    %0 = memref.load %arg0[%c0] : memref<1xf32, #tpu.memory_space<smem>>
    %c0_0 = arith.constant 0 : index
    %c0_1 = arith.constant 0 : index
    %1 = vector.load %arg2[%c0_0, %c0_1] : memref<8x64xf32, #tpu.memory_space<vmem>>, vector<1x64xf32>
    %c1 = arith.constant 1 : index
    %c0_2 = arith.constant 0 : index
    %2 = vector.load %arg2[%c1, %c0_2] : memref<8x64xf32, #tpu.memory_space<vmem>>, vector<1x64xf32>
    %c2 = arith.constant 2 : index
    %c0_3 = arith.constant 0 : index
    %3 = vector.load %arg2[%c2, %c0_3] : memref<8x64xf32, #tpu.memory_space<vmem>>, vector<1x64xf32>
    %c3 = arith.constant 3 : index
    %c0_4 = arith.constant 0 : index
    %4 = vector.load %arg2[%c3, %c0_4] : memref<8x64xf32, #tpu.memory_space<vmem>>, vector<1x64xf32>
    %c4 = arith.constant 4 : index
    %c0_5 = arith.constant 0 : index
    %5 = vector.load %arg2[%c4, %c0_5] : memref<8x64xf32, #tpu.memory_space<vmem>>, vector<1x64xf32>
    %6 = vector.shape_cast %1 : vector<1x64xf32> to vector<1x64xf32>
    %7 = vector.broadcast %6 : vector<1x64xf32> to vector<8x64xf32>
    %8 = vector.broadcast %0 : f32 to vector<8x64xf32>
    %9 = arith.mulf %8, %7 : vector<8x64xf32>
    %10 = vector.broadcast %2 : vector<1x64xf32> to vector<8x64xf32>
    %11 = arith.addf %9, %10 : vector<8x64xf32>
    %12 = math.tanh %11 : vector<8x64xf32>
    %c0_6 = arith.constant 0 : index
    %c0_7 = arith.constant 0 : index
    %c0_8 = arith.constant 0 : index
    %13 = vector.load %arg3[%c0_6, %c0_7, %c0_8] : memref<3x64x64xf32, #tpu.memory_space<vmem>>, vector<1x64x64xf32>
    %14 = vector.shape_cast %13 : vector<1x64x64xf32> to vector<64x64xf32>
    %cst = arith.constant dense<0.000000e+00> : vector<8x64xf32>
    %15 = tpu.matmul %12, %14, %cst {dimension_numbers = #tpu.dot_dimension_numbers<[1], [0], [0], [1], [0, 0, 1, 1], [], []>} : vector<8x64xf32>, vector<64x64xf32>, vector<8x64xf32> -> vector<8x64xf32>
    %16 = vector.broadcast %3 : vector<1x64xf32> to vector<8x64xf32>
    %17 = arith.addf %15, %16 : vector<8x64xf32>
    %18 = math.tanh %17 : vector<8x64xf32>
    %c1_9 = arith.constant 1 : index
    %c0_10 = arith.constant 0 : index
    %c0_11 = arith.constant 0 : index
    %19 = vector.load %arg3[%c1_9, %c0_10, %c0_11] : memref<3x64x64xf32, #tpu.memory_space<vmem>>, vector<1x64x64xf32>
    %20 = vector.shape_cast %19 : vector<1x64x64xf32> to vector<64x64xf32>
    %cst_12 = arith.constant dense<0.000000e+00> : vector<8x64xf32>
    %21 = tpu.matmul %18, %20, %cst_12 {dimension_numbers = #tpu.dot_dimension_numbers<[1], [0], [0], [1], [0, 0, 1, 1], [], []>} : vector<8x64xf32>, vector<64x64xf32>, vector<8x64xf32> -> vector<8x64xf32>
    %22 = vector.broadcast %4 : vector<1x64xf32> to vector<8x64xf32>
    %23 = arith.addf %21, %22 : vector<8x64xf32>
    %24 = math.tanh %23 : vector<8x64xf32>
    %c2_13 = arith.constant 2 : index
    %c0_14 = arith.constant 0 : index
    %c0_15 = arith.constant 0 : index
    %25 = vector.load %arg3[%c2_13, %c0_14, %c0_15] : memref<3x64x64xf32, #tpu.memory_space<vmem>>, vector<1x64x64xf32>
    %26 = vector.shape_cast %25 : vector<1x64x64xf32> to vector<64x64xf32>
    %cst_16 = arith.constant dense<0.000000e+00> : vector<8x64xf32>
    %27 = tpu.matmul %24, %26, %cst_16 {dimension_numbers = #tpu.dot_dimension_numbers<[1], [0], [0], [1], [0, 0, 1, 1], [], []>} : vector<8x64xf32>, vector<64x64xf32>, vector<8x64xf32> -> vector<8x64xf32>
    %28 = vector.broadcast %5 : vector<1x64xf32> to vector<8x64xf32>
    %29 = arith.addf %27, %28 : vector<8x64xf32>
    %30 = vector.extract_strided_slice %29 {offsets = [0, 0], sizes = [1, 1], strides = [1, 1]} : vector<8x64xf32> to vector<1x1xf32>
    %cst_17 = arith.constant 2.000000e+01 : f32
    %31 = vector.broadcast %cst_17 : f32 to vector<1x1xf32>
    %32 = arith.cmpf ogt, %30, %31 : vector<1x1xf32>
    %cst_18 = arith.constant 2.000000e+01 : f32
    %33 = vector.broadcast %cst_18 : f32 to vector<1x1xf32>
    %34 = arith.minimumf %30, %33 : vector<1x1xf32>
    %35 = math.exp %34 : vector<1x1xf32>
    %36 = math.log1p %35 : vector<1x1xf32>
    %37 = arith.select %32, %30, %36 : vector<1x1xi1>, vector<1x1xf32>
    %38 = vector.extract_strided_slice %29 {offsets = [0, 1], sizes = [1, 1], strides = [1, 1]} : vector<8x64xf32> to vector<1x1xf32>
    %cst_19 = arith.constant 0.000000e+00 : f32
    %39 = vector.broadcast %cst_19 : f32 to vector<1x1xf32>
    %40 = arith.subf %39, %38 : vector<1x1xf32>
    %41 = math.exp %40 : vector<1x1xf32>
    %cst_20 = arith.constant 1.000000e+00 : f32
    %42 = vector.broadcast %cst_20 : f32 to vector<1x1xf32>
    %43 = arith.addf %42, %41 : vector<1x1xf32>
    %cst_21 = arith.constant 1.000000e+00 : f32
    %44 = vector.broadcast %cst_21 : f32 to vector<1x1xf32>
    %45 = arith.divf %44, %43 : vector<1x1xf32>
    %c0_22 = arith.constant 0 : index
    %c0_23 = arith.constant 0 : index
    %46 = vector.load %arg1[%c0_22, %c0_23] : memref<4x4xf32, #tpu.memory_space<vmem>>, vector<4x1xf32>
    %c0_24 = arith.constant 0 : index
    %c1_25 = arith.constant 1 : index
    %47 = vector.load %arg1[%c0_24, %c1_25] : memref<4x4xf32, #tpu.memory_space<vmem>>, vector<4x1xf32>
    %c0_26 = arith.constant 0 : index
    %c3_27 = arith.constant 3 : index
    %48 = vector.load %arg1[%c0_26, %c3_27] : memref<4x4xf32, #tpu.memory_space<vmem>>, vector<4x1xf32>
    %49 = vector.broadcast %37 : vector<1x1xf32> to vector<4x1xf32>
    %50 = arith.mulf %49, %46 : vector<4x1xf32>
    %51 = arith.mulf %50, %47 : vector<4x1xf32>
    %52 = vector.broadcast %45 : vector<1x1xf32> to vector<4x1xf32>
    %53 = arith.mulf %52, %47 : vector<4x1xf32>
    %cst_28 = arith.constant 0.000000e+00 : f32
    %54 = vector.broadcast %cst_28 : f32 to vector<4x1xf32>
    %55 = arith.subf %54, %51 : vector<4x1xf32>
    %56 = arith.addf %55, %48 : vector<4x1xf32>
    %57 = arith.subf %51, %53 : vector<4x1xf32>
    %58 = arith.subf %53, %48 : vector<4x1xf32>
    %59 = tpu.iota {dimensions = array<i32: 1>} : vector<4x3xi32>
    %c0_i32 = arith.constant 0 : i32
    %60 = vector.broadcast %c0_i32 : i32 to vector<4x3xi32>
    %61 = arith.cmpi eq, %59, %60 : vector<4x3xi32>
    %c1_i32 = arith.constant 1 : i32
    %62 = vector.broadcast %c1_i32 : i32 to vector<4x3xi32>
    %63 = arith.cmpi eq, %59, %62 : vector<4x3xi32>
    %64 = vector.shape_cast %57 : vector<4x1xf32> to vector<4x1xf32>
    %65 = vector.broadcast %64 : vector<4x1xf32> to vector<4x3xf32>
    %66 = vector.shape_cast %58 : vector<4x1xf32> to vector<4x1xf32>
    %67 = vector.broadcast %66 : vector<4x1xf32> to vector<4x3xf32>
    %68 = arith.select %63, %65, %67 : vector<4x3xi1>, vector<4x3xf32>
    %69 = vector.shape_cast %56 : vector<4x1xf32> to vector<4x1xf32>
    %70 = vector.broadcast %69 : vector<4x1xf32> to vector<4x3xf32>
    %71 = arith.select %61, %70, %68 : vector<4x3xi1>, vector<4x3xf32>
    %c0_29 = arith.constant 0 : index
    %c0_30 = arith.constant 0 : index
    %72 = vector.load %arg4[%c0_29, %c0_30] : memref<4x3xf32, #tpu.memory_space<vmem>>, vector<4x3xf32>
    tpu.vector_store %arg4[%c0_29, %c0_30], %71 {strides = array<i32>} : memref<4x3xf32, #tpu.memory_space<vmem>>, vector<4x3xf32>,
    return
  }
}

</mosaic_0001>

<llo_original>
// kernel: _ode_func_forward.1
$region0: #{_ode_func_forward.1}
  #allocation0 [shape = 'u32[]', space=smem, size = 0x4, offset = 0x4, fixed_abs, tag = 'smem constant byte address 0x4 - core index']
  #allocation1 [shape = 'u32[144,128]{1,0:T(1,128)}', space=vmem, size = 0x12000, scoped, tag = 'internal scratch']
  #allocation2 [shape = 'f32[1]{0:T(128)S(6)}', space=smem, size = 0x200, scoped, tag = 'scoped memory for _ode_func_forward.1']
  %s0 = inlined_call_operand.<no memory space> [shape: f32[1], index: 0, kind: input, shape index: {}]
  %s1 = inlined_call_operand.vmem [shape: f32[4,4], index: 1, kind: input, shape index: {}]
  %s2 = inlined_call_operand.vmem [shape: f32[8,64], index: 2, kind: input, shape index: {}]
  %s3 = inlined_call_operand.hbm [shape: f32[3,64,64], index: 3, kind: input, shape index: {}]
  %s4 = inlined_call_operand.hbm [shape: f32[4,3], index: 4, kind: output, shape index: {}]
  %s5 = sld [smem:[#allocation0]]
  $region30: #{_ode_func_forward.1} parent=0
    _
  %s7 = ssub.s32 1, %s5
  %s8 = scalar_select 0, %s7, %s5
  %9 = sst [smem:[#allocation2]] %s0
  $region1: #{_ode_func_forward.1} parent=0
    #allocation3 [shape = 'u8[98304]{0}', space=vmem, size = 0x18000, scoped, tag = 'input window, operand 3, single buffered']
    #allocation4 [shape = 's32[1]{0}', space=sflag, size = 0x4, scoped, tag = 'scoped memory for _ode_func_forward.1']
    #allocation5 [shape = 's32[1]{0}', space=sflag, size = 0x4, scoped, tag = 'scoped memory for _ode_func_forward.1']
    #allocation6 [shape = 'u8[2048]{0}', space=vmem, size = 0x800, scoped, tag = 'output window, operand 0, single buffered']
    %10 = vsyncpa [#allocation4], 0
    %11 = vsyncpa [#allocation5], 0
    // Predicated region
    $region2: #{_ode_func_forward.1} parent=1 // pred_check
      _
    $region3: #{_ode_func_forward.1} parent=1 // pred_check_branch
      %13 = sbr.rel (0) target = $region5
    $region4: #{_ode_func_forward.1} parent=1 // pred_region
      _
    $region5: #{_ode_func_forward.1} parent=1 // pred_fallthru
      _
    // Predicated region
    $region6: #{_ode_func_forward.1} parent=1 // pred_check
      _
    $region7: #{_ode_func_forward.1} parent=1 // pred_check_branch
      %15 = sbr.rel (0) target = $region9
    $region8: #{_ode_func_forward.1} parent=1 // pred_region
      _
    $region9: #{_ode_func_forward.1} parent=1 // pred_fallthru
      _
    // Predicated region
    $region10: #{_ode_func_forward.1} parent=1 // pred_check
      _
    $region11: #{_ode_func_forward.1} parent=1 // pred_check_branch
      %17 = sbr.rel (0) target = $region13
    $region12: #{_ode_func_forward.1} parent=1 // pred_region
      _
    $region13: #{_ode_func_forward.1} parent=1 // pred_fallthru
      _
    // Predicated region
    $region14: #{_ode_func_forward.1} parent=1 // pred_check
      _
    $region15: #{_ode_func_forward.1} parent=1 // pred_check_branch
      %19 = sbr.rel (0) target = $region17
    $region16: #{_ode_func_forward.1} parent=1 // pred_region
      %s21 = ssub.s32 3072, 3072
      %22 = vsyncadd [#allocation4], %s21
      %s23 = sshll.u32 [#allocation3], 4
      %s24 = int_to_ptr.vmem [resolvable:$true] %s23
      %29 = dma.hbm_to_vmem [thread:$0]  %s3, 3072, %s24, [#allocation4], 128, 128, 8
    $region17: #{_ode_func_forward.1} parent=1 // pred_fallthru
      _
    // Predicated region
    $region18: #{_ode_func_forward.1} parent=1 // pred_check
      _
    $region19: #{_ode_func_forward.1} parent=1 // pred_check_branch
      %31 = sbr.rel (0) target = $region21
    $region20: #{_ode_func_forward.1} parent=1 // pred_region
      %32 = dma.done [#allocation4], 3072
    $region21: #{_ode_func_forward.1} parent=1 // pred_fallthru
      _
    %s33 = sld [smem:[#allocation2]]
    %v34 = vld [vmem:[%s2] sm:$0x1]
    %v35 = vld [vmem:[%s2 + $0x1] sm:$0x1]
    %v36 = vld [vmem:[%s2 + $0x2] sm:$0x1]
    %v37 = vld [vmem:[%s2 + $0x3] sm:$0x1]
    %v38 = vld [vmem:[%s2 + $0x4] sm:$0x1]
    %v39 = vlaneseq
    %v40 = vshrl.u32 %v39, 7
    %v41 = vsub.s32 0, %v40
    %v42 = vrot.slane %v34, %v41
    %v43 = vstv %s33
    %v44 = vmul.f32 %v43, %v42
    %v45 = vlaneseq
    %v46 = vshrl.u32 %v45, 7
    %v47 = vsub.s32 0, %v46
    %v48 = vrot.slane %v35, %v47
    %v49 = vadd.f32 %v44, %v48
    %v50 = vtanh.pop %v49
    %v51 = vld [vmem:[#allocation3] sm:$0xff]
    %v52 = vld [vmem:[#allocation3 + $0x8] sm:$0xff]
    %v53 = vld [vmem:[#allocation3 + $0x10] sm:$0xff]
    %v54 = vld [vmem:[#allocation3 + $0x18] sm:$0xff]
    %v55 = vld [vmem:[#allocation3 + $0x20] sm:$0xff]
    %v56 = vld [vmem:[#allocation3 + $0x28] sm:$0xff]
    %v57 = vld [vmem:[#allocation3 + $0x30] sm:$0xff]
    %v58 = vld [vmem:[#allocation3 + $0x38] sm:$0xff]
    %v59 = vlaneseq
    %v60 = vshrl.u32 %v59, 7
    %v61 = vsub.s32 0, %v60
    %v62 = vrot.slane %v36, %v61
    %vm63 = vcmask 523264
    %v65 = vsel %vm63, %v50, 0
    %67 = vmatprep.subr.mxu0 0.0
    %68 = vmatpush1.msra.mxu0 %v51
    %69 = vmatprep.subr.mxu0 0.0
    %70 = vmatpush1.msra.mxu0 %v52
    %71 = vmatprep.subr.mxu0 0.0
    %72 = vmatpush1.msra.mxu0 %v53
    %73 = vmatprep.subr.mxu0 0.0
    %74 = vmatpush1.msra.mxu0 %v54
    %75 = vmatprep.subr.mxu0 0.0
    %76 = vmatpush1.msra.mxu0 %v55
    %77 = vmatprep.subr.mxu0 0.0
    %78 = vmatpush1.msra.mxu0 %v56
    %79 = vmatprep.subr.mxu0 0.0
    %80 = vmatpush1.msra.mxu0 %v57
    %81 = vmatprep.subr.mxu0 0.0
    %82 = vmatpush1.msra.mxu0 %v58
    %83 = vmatprep.subr.mxu0 0.0
    %84 = vmatpush1.msra.mxu0 0.0
    %85 = vmatprep.subr.mxu0 0.0
    %86 = vmatpush1.msra.mxu0 0.0
    %87 = vmatprep.subr.mxu0 0.0
    %88 = vmatpush1.msra.mxu0 0.0
    %89 = vmatprep.subr.mxu0 0.0
    %90 = vmatpush1.msra.mxu0 0.0
    %91 = vmatprep.subr.mxu0 0.0
    %92 = vmatpush1.msra.mxu0 0.0
    %93 = vmatprep.subr.mxu0 0.0
    %94 = vmatpush1.msra.mxu0 0.0
    %95 = vmatprep.subr.mxu0 0.0
    %96 = vmatpush1.msra.mxu0 0.0
    %97 = vmatprep.subr.mxu0 0.0
    %98 = vmatpush1.msra.mxu0 0.0
    %99 = vmatprep.subr.mxu0 0.0
    %100 = vmatpush1.msra.mxu0 0.0
    %101 = vmatprep.subr.mxu0 0.0
    %102 = vmatpush1.msra.mxu0 0.0
    %103 = vmatprep.subr.mxu0 0.0
    %104 = vmatpush1.msra.mxu0 0.0
    %105 = vmatprep.subr.mxu0 0.0
    %106 = vmatpush1.msra.mxu0 0.0
    %107 = vmatprep.subr.mxu0 0.0
    %108 = vmatpush1.msra.mxu0 0.0
    %109 = vmatprep.subr.mxu0 0.0
    %110 = vmatpush1.msra.mxu0 0.0
    %111 = vmatprep.subr.mxu0 0.0
    %112 = vmatpush1.msra.mxu0 0.0
    %113 = vmatprep.subr.mxu0 0.0
    %114 = vmatpush1.msra.mxu0 0.0
    %115 = vmatprep.subr.mxu0 0.0
    %116 = vmatpush1.msra.mxu0 0.0
    %117 = vmatprep.subr.mxu0 0.0
    %118 = vmatpush1.msra.mxu0 0.0
    %119 = vmatprep.subr.mxu0 0.0
    %120 = vmatpush1.msra.mxu0 0.0
    %121 = vmatprep.subr.mxu0 0.0
    %122 = vmatpush1.msra.mxu0 0.0
    %123 = vmatprep.subr.mxu0 0.0
    %124 = vmatpush1.msra.mxu0 0.0
    %125 = vmatprep.subr.mxu0 0.0
    %126 = vmatpush1.msra.mxu0 0.0
    %127 = vmatprep.subr.mxu0 0.0
    %128 = vmatpush1.msra.mxu0 0.0
    %129 = vmatprep.subr.mxu0 0.0
    %130 = vmatpush1.msra.mxu0 0.0
    %131 = vmatprep.mubr.f32.mxu0 0.0
    %132 = vmatmul.mubr.f32.gmra.mrb[0].mxu0 %v65
    %v133 = vpop.f32.mrb[0].mxu0
    %v134 = vadd.f32 %v62, %v133
    %v135 = vpop.f32.mrb[0].mxu0
    %136 = vdwg.mxu0
    %v137 = vtanh.pop %v134
    %s138 = scalar_lea.vmem [#allocation3], 64
    %v139 = vld [vmem:[%s138] sm:$0xff]
    %v140 = vld [vmem:[%s138 + $0x8] sm:$0xff]
    %v141 = vld [vmem:[%s138 + $0x10] sm:$0xff]
    %v142 = vld [vmem:[%s138 + $0x18] sm:$0xff]
    %v143 = vld [vmem:[%s138 + $0x20] sm:$0xff]
    %v144 = vld [vmem:[%s138 + $0x28] sm:$0xff]
    %v145 = vld [vmem:[%s138 + $0x30] sm:$0xff]
    %v146 = vld [vmem:[%s138 + $0x38] sm:$0xff]
    %v147 = vlaneseq
    %v148 = vshrl.u32 %v147, 7
    %v149 = vsub.s32 0, %v148
    %v150 = vrot.slane %v37, %v149
    %v152 = vsel %vm63, %v137, 0
    %154 = vmatprep.subr.mxu0 0.0
    %155 = vmatpush1.msra.mxu0 %v139
    %156 = vmatprep.subr.mxu0 0.0
    %157 = vmatpush1.msra.mxu0 %v140
    %158 = vmatprep.subr.mxu0 0.0
    %159 = vmatpush1.msra.mxu0 %v141
    %160 = vmatprep.subr.mxu0 0.0
    %161 = vmatpush1.msra.mxu0 %v142
    %162 = vmatprep.subr.mxu0 0.0
    %163 = vmatpush1.msra.mxu0 %v143
    %164 = vmatprep.subr.mxu0 0.0
    %165 = vmatpush1.msra.mxu0 %v144
    %166 = vmatprep.subr.mxu0 0.0
    %167 = vmatpush1.msra.mxu0 %v145
    %168 = vmatprep.subr.mxu0 0.0
    %169 = vmatpush1.msra.mxu0 %v146
    %170 = vmatprep.subr.mxu0 0.0
    %171 = vmatpush1.msra.mxu0 0.0
    %172 = vmatprep.subr.mxu0 0.0
    %173 = vmatpush1.msra.mxu0 0.0
    %174 = vmatprep.subr.mxu0 0.0
    %175 = vmatpush1.msra.mxu0 0.0
    %176 = vmatprep.subr.mxu0 0.0
    %177 = vmatpush1.msra.mxu0 0.0
    %178 = vmatprep.subr.mxu0 0.0
    %179 = vmatpush1.msra.mxu0 0.0
    %180 = vmatprep.subr.mxu0 0.0
    %181 = vmatpush1.msra.mxu0 0.0
    %182 = vmatprep.subr.mxu0 0.0
    %183 = vmatpush1.msra.mxu0 0.0
    %184 = vmatprep.subr.mxu0 0.0
    %185 = vmatpush1.msra.mxu0 0.0
    %186 = vmatprep.subr.mxu0 0.0
    %187 = vmatpush1.msra.mxu0 0.0
    %188 = vmatprep.subr.mxu0 0.0
    %189 = vmatpush1.msra.mxu0 0.0
    %190 = vmatprep.subr.mxu0 0.0
    %191 = vmatpush1.msra.mxu0 0.0
    %192 = vmatprep.subr.mxu0 0.0
    %193 = vmatpush1.msra.mxu0 0.0
    %194 = vmatprep.subr.mxu0 0.0
    %195 = vmatpush1.msra.mxu0 0.0
    %196 = vmatprep.subr.mxu0 0.0
    %197 = vmatpush1.msra.mxu0 0.0
    %198 = vmatprep.subr.mxu0 0.0
    %199 = vmatpush1.msra.mxu0 0.0
    %200 = vmatprep.subr.mxu0 0.0
    %201 = vmatpush1.msra.mxu0 0.0
    %202 = vmatprep.subr.mxu0 0.0
    %203 = vmatpush1.msra.mxu0 0.0
    %204 = vmatprep.subr.mxu0 0.0
    %205 = vmatpush1.msra.mxu0 0.0
    %206 = vmatprep.subr.mxu0 0.0
    %207 = vmatpush1.msra.mxu0 0.0
    %208 = vmatprep.subr.mxu0 0.0
    %209 = vmatpush1.msra.mxu0 0.0
    %210 = vmatprep.subr.mxu0 0.0
    %211 = vmatpush1.msra.mxu0 0.0
    %212 = vmatprep.subr.mxu0 0.0
    %213 = vmatpush1.msra.mxu0 0.0
    %214 = vmatprep.subr.mxu0 0.0
    %215 = vmatpush1.msra.mxu0 0.0
    %216 = vmatprep.subr.mxu0 0.0
    %217 = vmatpush1.msra.mxu0 0.0
    %218 = vmatprep.mubr.f32.mxu0 0.0
    %219 = vmatmul.mubr.f32.gmra.mrb[0].mxu0 %v152
    %v220 = vpop.f32.mrb[0].mxu0
    %v221 = vadd.f32 %v150, %v220
    %v222 = vpop.f32.mrb[0].mxu0
    %223 = vdwg.mxu0
    %v224 = vtanh.pop %v221
    %s225 = scalar_lea.vmem [#allocation3], 128
    %v226 = vld [vmem:[%s225] sm:$0xff]
    %v227 = vld [vmem:[%s225 + $0x8] sm:$0xff]
    %v228 = vld [vmem:[%s225 + $0x10] sm:$0xff]
    %v229 = vld [vmem:[%s225 + $0x18] sm:$0xff]
    %v230 = vld [vmem:[%s225 + $0x20] sm:$0xff]
    %v231 = vld [vmem:[%s225 + $0x28] sm:$0xff]
    %v232 = vld [vmem:[%s225 + $0x30] sm:$0xff]
    %v233 = vld [vmem:[%s225 + $0x38] sm:$0xff]
    %v234 = vlaneseq
    %v235 = vshrl.u32 %v234, 7
    %v236 = vsub.s32 0, %v235
    %v237 = vrot.slane %v38, %v236
    %v239 = vsel %vm63, %v224, 0
    %241 = vmatprep.subr.mxu0 0.0
    %242 = vmatpush1.msra.mxu0 %v226
    %243 = vmatprep.subr.mxu0 0.0
    %244 = vmatpush1.msra.mxu0 %v227
    %245 = vmatprep.subr.mxu0 0.0
    %246 = vmatpush1.msra.mxu0 %v228
    %247 = vmatprep.subr.mxu0 0.0
    %248 = vmatpush1.msra.mxu0 %v229
    %249 = vmatprep.subr.mxu0 0.0
    %250 = vmatpush1.msra.mxu0 %v230
    %251 = vmatprep.subr.mxu0 0.0
    %252 = vmatpush1.msra.mxu0 %v231
    %253 = vmatprep.subr.mxu0 0.0
    %254 = vmatpush1.msra.mxu0 %v232
    %255 = vmatprep.subr.mxu0 0.0
    %256 = vmatpush1.msra.mxu0 %v233
    %257 = vmatprep.subr.mxu0 0.0
    %258 = vmatpush1.msra.mxu0 0.0
    %259 = vmatprep.subr.mxu0 0.0
    %260 = vmatpush1.msra.mxu0 0.0
    %261 = vmatprep.subr.mxu0 0.0
    %262 = vmatpush1.msra.mxu0 0.0
    %263 = vmatprep.subr.mxu0 0.0
    %264 = vmatpush1.msra.mxu0 0.0
    %265 = vmatprep.subr.mxu0 0.0
    %266 = vmatpush1.msra.mxu0 0.0
    %267 = vmatprep.subr.mxu0 0.0
    %268 = vmatpush1.msra.mxu0 0.0
    %269 = vmatprep.subr.mxu0 0.0
    %270 = vmatpush1.msra.mxu0 0.0
    %271 = vmatprep.subr.mxu0 0.0
    %272 = vmatpush1.msra.mxu0 0.0
    %273 = vmatprep.subr.mxu0 0.0
    %274 = vmatpush1.msra.mxu0 0.0
    %275 = vmatprep.subr.mxu0 0.0
    %276 = vmatpush1.msra.mxu0 0.0
    %277 = vmatprep.subr.mxu0 0.0
    %278 = vmatpush1.msra.mxu0 0.0
    %279 = vmatprep.subr.mxu0 0.0
    %280 = vmatpush1.msra.mxu0 0.0
    %281 = vmatprep.subr.mxu0 0.0
    %282 = vmatpush1.msra.mxu0 0.0
    %283 = vmatprep.subr.mxu0 0.0
    %284 = vmatpush1.msra.mxu0 0.0
    %285 = vmatprep.subr.mxu0 0.0
    %286 = vmatpush1.msra.mxu0 0.0
    %287 = vmatprep.subr.mxu0 0.0
    %288 = vmatpush1.msra.mxu0 0.0
    %289 = vmatprep.subr.mxu0 0.0
    %290 = vmatpush1.msra.mxu0 0.0
    %291 = vmatprep.subr.mxu0 0.0
    %292 = vmatpush1.msra.mxu0 0.0
    %293 = vmatprep.subr.mxu0 0.0
    %294 = vmatpush1.msra.mxu0 0.0
    %295 = vmatprep.subr.mxu0 0.0
    %296 = vmatpush1.msra.mxu0 0.0
    %297 = vmatprep.subr.mxu0 0.0
    %298 = vmatpush1.msra.mxu0 0.0
    %299 = vmatprep.subr.mxu0 0.0
    %300 = vmatpush1.msra.mxu0 0.0
    %301 = vmatprep.subr.mxu0 0.0
    %302 = vmatpush1.msra.mxu0 0.0
    %303 = vmatprep.subr.mxu0 0.0
    %304 = vmatpush1.msra.mxu0 0.0
    %305 = vmatprep.mubr.f32.mxu0 0.0
    %306 = vmatmul.mubr.f32.gmra.mrb[0].mxu0 %v239
    %v307 = vpop.f32.mrb[0].mxu0
    %v308 = vadd.f32 %v237, %v307
    %v309 = vpop.f32.mrb[0].mxu0
    %310 = vdwg.mxu0
    %vm311 = vcmp.gt.f32.partialorder %v308, 20.0
    %v312 = vmin.f32 %v308, 20.0
    %v313 = vmul.f32 %v312, 1.442695
    %v314 = vpow.pop %v313
    %v315 = vadd.f32 %v314, 1.0
    %v316 = vlog2.pop %v315
    %v317 = vmul.f32 %v316, 0.6931472
    %v318 = vmul.f32 -0.5, %v314
    %v319 = vadd.f32 %v318, 1.0
    %v320 = vmul.f32 %v319, %v314
    %v321 = vand.u32 2147483647, %v314
    %vm322 = vcmp.lt.f32.partialorder %v321, 0.0004427343
    %v323 = vsel %vm322, %v320, %v317
    %v324 = vsel %vm311, %v308, %v323
    %v325 = vsub.f32 0.0, %v308
    %v326 = vmul.f32 %v325, 1.442695
    %v327 = vpow.pop %v326
    %v328 = vadd.f32 %v327, 1.0
    %v329 = vrcp.pop %v328
    %v330 = vmul.f32 1.0, %v329
    %v331 = vld [vmem:[%s1] sm:$0xf]
    %v332 = vlaneseq
    %v333 = vshrl.u32 %v332, 7
    %v334 = vsub.s32 0, %v333
    %v335 = vrot.slane %v324, %v334
    %v336 = vmul.f32 %v335, %v331
    %338 = vrot.lane.b32.xlu0 %v331, 127
    %v339 = vpop.permute.xlu0 %338
    %v341 = vmul.f32 %v336, %v339
    %v342 = vlaneseq
    %v343 = vshrl.u32 %v342, 7
    %v344 = vsub.s32 0, %v343
    %v345 = vrot.slane %v330, %v344
    %v346 = vmul.f32 %v345, %v331
    %v347 = vsub.f32 0.0, %v341
    %348 = vrot.lane.b32.xlu0 %v331, 125
    %v349 = vpop.permute.xlu0 %348
    %v351 = vadd.f32 %v347, %v349
    %353 = vrot.lane.b32.xlu0 %v346, 127
    %v354 = vpop.permute.xlu0 %353
    %v356 = vsub.f32 %v341, %v354
    %357 = vrot.lane.b32.xlu0 %v331, 126
    %v358 = vpop.permute.xlu0 %357
    %v360 = vsub.f32 %v346, %v358
    %v361 = vlaneseq
    %v362 = vand.u32 %v361, 127
    %vm363 = vcmp.eq.s32.totalorder %v362, 0
    %vm364 = vcmp.eq.s32.totalorder %v362, 1
    %366 = vset.pattern.permute.xlu0 0
    %367 = vperm.xlu0 %366, %v356
    %v368 = vpop.permute.xlu0 %367
    %371 = vset.pattern.permute.xlu0 1
    %372 = vperm.xlu0 %371, %v360
    %v373 = vpop.permute.xlu0 %372
    %v375 = vsel %vm364, %v368, %v373
    %377 = vset.pattern.permute.xlu0 0
    %378 = vperm.xlu0 %377, %v351
    %v379 = vpop.permute.xlu0 %378
    %v381 = vsel %vm363, %v379, %v375
    %vm382 = vcmask 19456
    %383 = vst.msk [vmem:[#allocation6] sm:$0xf] %vm382, %v381
    // Predicated region
    $region22: #{_ode_func_forward.1} parent=1 // pred_check
      _
    $region23: #{_ode_func_forward.1} parent=1 // pred_check_branch
      %385 = sbr.rel (0) target = $region25
    $region24: #{_ode_func_forward.1} parent=1 // pred_region
      %s387 = ssub.s32 64, 64
      %388 = vsyncadd [#allocation5], %s387
      %s390 = sshll.u32 [#allocation6], 4
      %s391 = int_to_ptr.vmem [resolvable:$true] %s390
      %393 = dma.vmem_to_hbm [thread:$0]  %s391, 64, %s4, [#allocation5]
    $region25: #{_ode_func_forward.1} parent=1 // pred_fallthru
      _
    // Predicated region
    $region26: #{_ode_func_forward.1} parent=1 // pred_check
      _
    $region27: #{_ode_func_forward.1} parent=1 // pred_check_branch
      %395 = sbr.rel (0) target = $region29
    $region28: #{_ode_func_forward.1} parent=1 // pred_region
      %396 = dma.done [#allocation5], 64
    $region29: #{_ode_func_forward.1} parent=1 // pred_fallthru
      _
    %397 = vsyncpa [#allocation4], 1
    %398 = vsyncpa [#allocation5], 1

</llo_original>
